<compile_context>
chip_gen: v6e
topology: v6e:2x2x1
jax: 0.10.0
libtpu: 0.0.40
codegen_flags: <defaults>
</compile_context>

<pallas_src>
import functools

import jax
import jax.numpy as jnp
from jax import lax
from jax.experimental import pallas as pl
from jax.experimental.pallas import tpu as pltpu


# ---------------------------------------------------------------------------
# Generation-aware VMEM budgeting
# ---------------------------------------------------------------------------
def _vmem_params():
    """Returns (vmem_limit_bytes, resident_budget_bytes)."""
    phys = 64 * 1024 * 1024  # conservative default (v7x-class) if query fails
    try:
        info = pltpu.get_tpu_info()
        phys = int(getattr(info, "vmem_capacity_bytes", phys))
    except Exception:
        pass
    if phys <= 64 * 1024 * 1024:
        # v7x: 64 MiB physical per TensorCore. Leave headroom for compiler
        # internal scratch; resident set (2x in + 2x out + f32 temps) <= 28 MiB.
        return 40 * 1024 * 1024, 28 * 1024 * 1024
    # v5e / v6e: 128 MiB physical VMEM.
    return 64 * 1024 * 1024, 48 * 1024 * 1024


# ---------------------------------------------------------------------------
# Kernels
# ---------------------------------------------------------------------------
def _softmax_onepass_kernel(x_ref, o_ref):
    # One (N, TD) column strip; no cross-tile carry needed.
    x = x_ref[...].astype(jnp.float32)
    x_max = jnp.max(x, axis=0, keepdims=True)      # torch.max(x, dim=0, keepdims=True)
    x_exp = jnp.exp(x - x_max)
    partition = jnp.sum(x_exp, axis=0, keepdims=True)
    inv = 1.0 / partition                          # 1 reciprocal per column ...
    o_ref[...] = (x_exp * inv).astype(o_ref.dtype)  # ... N cheap VPU multiplies


def _softmax_stats_kernel(x_ref, m_ref, l_ref, m_sc, l_sc, *, n_rows, tile_n):
    # Pass 1 of the tall-N path: online max / rescaled-sum over row tiles.
    k = pl.program_id(1)

    @pl.when(k == 0)
    def _():
        m_sc[...] = jnp.full_like(m_sc, -jnp.inf)
        l_sc[...] = jnp.zeros_like(l_sc)

    x = x_ref[...].astype(jnp.float32)
    # Mask the ragged bottom tile (compiler-padded rows) to -inf so they never
    # contribute to the per-column max or sum.
    row = lax.broadcasted_iota(jnp.int32, x.shape, 0) + k * tile_n
    x = jnp.where(row < n_rows, x, -jnp.inf)

    m_prev = m_sc[...]
    m_new = jnp.maximum(m_prev, jnp.max(x, axis=0, keepdims=True))
    l_sc[...] = (l_sc[...] * jnp.exp(m_prev - m_new)
                 + jnp.sum(jnp.exp(x - m_new), axis=0, keepdims=True))
    m_sc[...] = m_new

    @pl.when(k == pl.num_programs(1) - 1)
    def _():
        m_ref[...] = m_sc[...]
        l_ref[...] = l_sc[...]


def _softmax_norm_kernel(x_ref, m_ref, l_ref, o_ref):
    # Pass 2 of the tall-N path: each (TN, TD) block independent given (m, l).
    x = x_ref[...].astype(jnp.float32)
    inv = 1.0 / l_ref[...]                         # (1, TD) reciprocal, broadcast
    o_ref[...] = (jnp.exp(x - m_ref[...]) * inv).astype(o_ref.dtype)


# ---------------------------------------------------------------------------
# pallas_call wrappers
# ---------------------------------------------------------------------------
def _softmax_single_pass(x, td, vmem_limit):
    n, d = x.shape
    itemsize = x.dtype.itemsize
    cost = pl.CostEstimate(
        flops=5 * n * d,
        transcendentals=n * d,
        bytes_accessed=2 * n * d * itemsize,
    )
    return pl.pallas_call(
        _softmax_onepass_kernel,
        out_shape=jax.ShapeDtypeStruct((n, d), x.dtype),
        grid=(pl.cdiv(d, td),),
        in_specs=[pl.BlockSpec((n, td), lambda j: (0, j))],
        out_specs=pl.BlockSpec((n, td), lambda j: (0, j)),
        compiler_params=pltpu.CompilerParams(
            dimension_semantics=("parallel",),   # column tiles split across TCs
            vmem_limit_bytes=vmem_limit,
        ),
        cost_estimate=cost,
    )(x)


def _softmax_two_pass(x, vmem_limit, resident_budget, tile_n=None, tile_d=None):
    n, d = x.shape
    itemsize = x.dtype.itemsize

    # Column tile: lane-dense multiple of 128 (or full d if narrow).
    if tile_d is None:
        tile_d = d if d <= 128 else min(512, (d // 128) * 128)
    # Row tile: multiple of 8, sized so 2x in + 2x out + f32 temps fit budget.
    if tile_n is None:
        per_row = tile_d * (4 * itemsize + 2 * 4)
        tile_n = max(8, (resident_budget // per_row) // 8 * 8)
    tile_n = min(tile_n, ((n + 7) // 8) * 8)

    nc = pl.cdiv(d, tile_d)
    nr = pl.cdiv(n, tile_n)

    stats_kernel = functools.partial(_softmax_stats_kernel, n_rows=n, tile_n=tile_n)
    stats_cost = pl.CostEstimate(
        flops=4 * n * d,
        transcendentals=n * d,
        bytes_accessed=n * d * itemsize + 2 * d * 4,
    )
    m, l = pl.pallas_call(
        stats_kernel,
        out_shape=(jax.ShapeDtypeStruct((1, d), jnp.float32),
                   jax.ShapeDtypeStruct((1, d), jnp.float32)),
        grid=(nc, nr),                              # reduction (row) axis last
        in_specs=[pl.BlockSpec((tile_n, tile_d), lambda j, k: (k, j))],
        out_specs=(pl.BlockSpec((1, tile_d), lambda j, k: (0, j)),
                   pl.BlockSpec((1, tile_d), lambda j, k: (0, j))),
        scratch_shapes=[pltpu.VMEM((1, tile_d), jnp.float32),
                        pltpu.VMEM((1, tile_d), jnp.float32)],
        compiler_params=pltpu.CompilerParams(
            dimension_semantics=("parallel", "arbitrary"),
            vmem_limit_bytes=vmem_limit,
        ),
        cost_estimate=stats_cost,
    )(x)

    norm_cost = pl.CostEstimate(
        flops=3 * n * d,
        transcendentals=n * d,
        bytes_accessed=2 * n * d * itemsize + 2 * d * 4,
    )
    return pl.pallas_call(
        _softmax_norm_kernel,
        out_shape=jax.ShapeDtypeStruct((n, d), x.dtype),
        grid=(nc, nr),
        in_specs=[pl.BlockSpec((tile_n, tile_d), lambda j, k: (k, j)),
                  pl.BlockSpec((1, tile_d), lambda j, k: (0, j)),
                  pl.BlockSpec((1, tile_d), lambda j, k: (0, j))],
        out_specs=pl.BlockSpec((tile_n, tile_d), lambda j, k: (k, j)),
        compiler_params=pltpu.CompilerParams(
            dimension_semantics=("parallel", "parallel"),
            vmem_limit_bytes=vmem_limit,
        ),
        cost_estimate=norm_cost,
    )(x, m, l)


def _softmax_stable_2d(x):
    n, d = x.shape
    itemsize = x.dtype.itemsize
    vmem_limit, resident_budget = _vmem_params()

    # Resident bytes per column of a full-N strip:
    #   double-buffered input + double-buffered output + 2 f32 compute temps.
    per_col = n * (2 * itemsize + 2 * itemsize + 2 * 4)

    if d <= 128:
        if per_col * d <= resident_budget:
            return _softmax_single_pass(x, d, vmem_limit)
        return _softmax_two_pass(x, vmem_limit, resident_budget)

    td = (resident_budget // per_col) // 128 * 128
    if td >= 256:
        # Keep >= ~4 column tiles (>= 2x TensorCores) when d is wide enough
        # that the cap does not push TD back below the 512-lane HBM sweet spot.
        cap = (d // 4) // 128 * 128
        if cap >= 512:
            td = min(td, cap)
        td = min(td, max(128, (d // 128) * 128))
        return _softmax_single_pass(x, td, vmem_limit)

    # Tall input: a full-N strip would force TD < 256 (strided, inefficient HBM
    # segments) or overflow VMEM -> N-tiled two-pass path.
    return _softmax_two_pass(x, vmem_limit, resident_budget)


def softmax_stable(x):
    """Matches PyTorch SoftmaxStable.forward: softmax over dim 0, any rank."""
    orig_shape = x.shape
    n = orig_shape[0]
    x2 = x if x.ndim == 2 else x.reshape(n, -1)
    out = _softmax_stable_2d(x2)
    return out.reshape(orig_shape)


if __name__ == "__main__":
    key = jax.random.PRNGKey(0)

    # Small shape implied by the module: seq=8 rows (reduced over), hidden=32.
    x = jax.random.normal(key, (8, 32), dtype=jnp.float32)
    out = jax.block_until_ready(softmax_stable(x))
    ref = jax.nn.softmax(x, axis=0)
    assert out.shape == x.shape
    assert jnp.allclose(out, ref, atol=1e-6, rtol=1e-6)
    assert jnp.allclose(jnp.sum(out, axis=0), jnp.ones((32,)), atol=1e-6)

    # Multi-tile single-pass path (lane-dense, pipelined, >= 4 column tiles).
    x_big = jax.random.normal(jax.random.PRNGKey(0), (512, 2048), dtype=jnp.float32)
    out_big = jax.block_until_ready(softmax_stable(x_big))
    ref_big = jax.nn.softmax(x_big, axis=0)
    assert jnp.allclose(out_big, ref_big, atol=1e-6, rtol=1e-6)

    # Two-pass N-tiled path, forced with small tiles so the online max/sum
    # accumulation and ragged row/lane masking are exercised at small shapes.
    vmem_limit, resident_budget = _vmem_params()
    x_tall = jax.random.normal(jax.random.PRNGKey(0), (500, 320), dtype=jnp.float32)
    out_tall = jax.block_until_ready(
        _softmax_two_pass(x_tall, vmem_limit, resident_budget, tile_n=128, tile_d=128))
    ref_tall = jax.nn.softmax(x_tall, axis=0)
    assert jnp.allclose(out_tall, ref_tall, atol=2e-6, rtol=1e-5)

    print("KERNEL_OK")
</pallas_src>

<mosaic_0001>
module attributes {stable_mosaic.version = 11 : i64} {
  func.func @_softmax_onepass_kernel(%arg0: i32, %arg1: memref<8x32xf32, #tpu.memory_space<vmem>>, %arg2: memref<8x32xf32, #tpu.memory_space<vmem>>) attributes {dimension_semantics = [#tpu.dimension_semantics<parallel>], iteration_bounds = array<i64: 1>, scalar_prefetch = 0 : i64, scratch_operands = 0 : i64, tpu.core_type = #tpu.core_type<tc>, window_params = [{transform_indices = @transform_0, window_bounds = array<i64: 8, 32>}, {transform_indices = @transform_1, window_bounds = array<i64: 8, 32>}]} {
    %c0 = arith.constant 0 : index
    %c0_0 = arith.constant 0 : index
    %0 = vector.load %arg1[%c0, %c0_0] : memref<8x32xf32, #tpu.memory_space<vmem>>, vector<8x32xf32>
    %cst = arith.constant dense<0xFF800000> : vector<32xf32>
    %1 = vector.multi_reduction <maximumf>, %0, %cst [0] : vector<8x32xf32> to vector<32xf32>
    %2 = vector.shape_cast %1 : vector<32xf32> to vector<1x32xf32>
    %3 = vector.broadcast %2 : vector<1x32xf32> to vector<8x32xf32>
    %4 = arith.subf %0, %3 : vector<8x32xf32>
    %5 = math.exp %4 : vector<8x32xf32>
    %cst_1 = arith.constant dense<0.000000e+00> : vector<32xf32>
    %6 = vector.multi_reduction <add>, %5, %cst_1 [0] : vector<8x32xf32> to vector<32xf32>
    %7 = vector.shape_cast %6 : vector<32xf32> to vector<1x32xf32>
    %cst_2 = arith.constant 1.000000e+00 : f32
    %8 = vector.broadcast %cst_2 : f32 to vector<1x32xf32>
    %9 = arith.divf %8, %7 : vector<1x32xf32>
    %10 = vector.broadcast %9 : vector<1x32xf32> to vector<8x32xf32>
    %11 = arith.mulf %5, %10 : vector<8x32xf32>
    %c0_3 = arith.constant 0 : index
    %c0_4 = arith.constant 0 : index
    %12 = vector.load %arg2[%c0_3, %c0_4] : memref<8x32xf32, #tpu.memory_space<vmem>>, vector<8x32xf32>
    tpu.vector_store %arg2[%c0_3, %c0_4], %11 {strides = array<i32>} : memref<8x32xf32, #tpu.memory_space<vmem>>, vector<8x32xf32>,
    return
  }
  func.func @transform_0(%arg0: i32) -> (i32, i32) {
    %c0_i32 = arith.constant 0 : i32
    %c0_i32_0 = arith.constant 0 : i32
    return %c0_i32, %arg0 : i32, i32
  }
  func.func @transform_1(%arg0: i32) -> (i32, i32) {
    %c0_i32 = arith.constant 0 : i32
    %c0_i32_0 = arith.constant 0 : i32
    return %c0_i32, %arg0 : i32, i32
  }
}

</mosaic_0001>

<llo_original>
// kernel: tpu_custom_call.1
$region0: #{tpu_custom_call.1}
  #allocation0 [shape = 'u32[]', space=smem, size = 0x4, offset = 0x4, fixed_abs, tag = 'smem constant byte address 0x4 - core index']
  #allocation1 [shape = 'u32[144,128]{1,0:T(1,128)}', space=vmem, size = 0x12000, scoped, tag = 'internal scratch']
  %s0 = inlined_call_operand.hbm [shape: f32[8,32], index: 0, kind: input, shape index: {}]
  %s1 = inlined_call_operand.hbm [shape: f32[8,32], index: 1, kind: output, shape index: {}]
  %s2 = sld [smem:[#allocation0]]
  $region18: #{tpu_custom_call.1} parent=0
    _
  %s4 = ssub.s32 1, %s2
  %s5 = scalar_select 0, %s4, %s2
  $region1: #{tpu_custom_call.1} parent=0
    #allocation2 [shape = 'u8[4096]{0}', space=vmem, size = 0x1000, scoped, tag = 'input window, operand 0, single buffered']
    #allocation3 [shape = 's32[1]{0}', space=sflag, size = 0x4, scoped, tag = 'scoped memory for tpu_custom_call.1']
    #allocation4 [shape = 's32[1]{0}', space=sflag, size = 0x4, scoped, tag = 'scoped memory for tpu_custom_call.1']
    #allocation5 [shape = 'u8[4096]{0}', space=vmem, size = 0x1000, scoped, tag = 'output window, operand 0, single buffered']
    %6 = vsyncpa [#allocation3], 0
    %7 = vsyncpa [#allocation4], 0
    // Predicated region
    $region2: #{tpu_custom_call.1} parent=1 // pred_check
      _
    $region3: #{tpu_custom_call.1} parent=1 // pred_check_branch
      %9 = sbr.rel (0) target = $region5
    $region4: #{tpu_custom_call.1} parent=1 // pred_region
      %s11 = ssub.s32 128, 128
      %12 = vsyncadd [#allocation3], %s11
      %s14 = sshll.u32 [#allocation2], 4
      %s15 = int_to_ptr.vmem [resolvable:$true] %s14
      %17 = dma.hbm_to_vmem [thread:$0]  %s0, 128, %s15, [#allocation3]
    $region5: #{tpu_custom_call.1} parent=1 // pred_fallthru
      _
    // Predicated region
    $region6: #{tpu_custom_call.1} parent=1 // pred_check
      _
    $region7: #{tpu_custom_call.1} parent=1 // pred_check_branch
      %19 = sbr.rel (0) target = $region9
    $region8: #{tpu_custom_call.1} parent=1 // pred_region
      %20 = dma.done [#allocation3], 128
    $region9: #{tpu_custom_call.1} parent=1 // pred_fallthru
      _
    %v21 = vld [vmem:[#allocation2] sm:$0xff]
    %vm22 = vcmask 261120
    %v23 = vsel %vm22, %v21, -inf
    %v24 = vrot.slane %v23, 4
    %v25 = vmax.f32 %v23, %v24
    %v26 = vrot.slane %v25, 2
    %v27 = vmax.f32 %v25, %v26
    %v28 = vrot.slane %v27, 1
    %v29 = vmax.f32 %v27, %v28
    %v30 = vsub.f32 %v21, %v29
    %v31 = vmul.f32 %v30, 1.442695
    %v32 = vpow.pop %v31
    %v33 = vsel %vm22, %v32, 0.0
    %v34 = vrot.slane %v33, 4
    %v35 = vadd.f32 %v33, %v34
    %v36 = vrot.slane %v35, 2
    %v37 = vadd.f32 %v35, %v36
    %v38 = vrot.slane %v37, 1
    %v39 = vadd.f32 %v37, %v38
    %v40 = vrcp.pop %v39
    %v41 = vmul.f32 1.0, %v40
    %v42 = vmul.f32 %v32, %v41
    %43 = vst.msk [vmem:[#allocation5] sm:$0xff] %vm22, %v42
    // Predicated region
    $region10: #{tpu_custom_call.1} parent=1 // pred_check
      _
    $region11: #{tpu_custom_call.1} parent=1 // pred_check_branch
      %45 = sbr.rel (0) target = $region13
    $region12: #{tpu_custom_call.1} parent=1 // pred_region
      %s47 = ssub.s32 128, 128
      %48 = vsyncadd [#allocation4], %s47
      %s50 = sshll.u32 [#allocation5], 4
      %s51 = int_to_ptr.vmem [resolvable:$true] %s50
      %53 = dma.vmem_to_hbm [thread:$0]  %s51, 128, %s1, [#allocation4]
    $region13: #{tpu_custom_call.1} parent=1 // pred_fallthru
      _
    // Predicated region
    $region14: #{tpu_custom_call.1} parent=1 // pred_check
      _
    $region15: #{tpu_custom_call.1} parent=1 // pred_check_branch
      %55 = sbr.rel (0) target = $region17
    $region16: #{tpu_custom_call.1} parent=1 // pred_region
      %56 = dma.done [#allocation4], 128
    $region17: #{tpu_custom_call.1} parent=1 // pred_fallthru
      _
    %57 = vsyncpa [#allocation3], 1
    %58 = vsyncpa [#allocation4], 1

</llo_original>
